<compile_context>
chip_gen: v7x
topology: tpu7x:2x2x1
jax: 0.10.0
libtpu: 0.0.40
codegen_flags: <defaults>
</compile_context>

<pallas_src>
import functools

import jax
import jax.numpy as jnp
from jax.experimental import pallas as pl
from jax.experimental.pallas import tpu as pltpu

KH = KW = 3          # conv2 kernel (stride 1, padding 1); conv1 is 1x1
LEAKY_SLOPE = 0.1

# tap (kh, kw) -> row of the (8, L) mask matrix (None = center tap, no mask needed)
#   rows: 0: w>0      1: w<W-1    2: h>0        3: h<H-1
#         4: h>0&w>0  5: h>0&w<W-1  6: h<H-1&w>0  7: h<H-1&w<W-1
_TAP_MASK_ROW = {
    (0, 0): 4, (0, 1): 2, (0, 2): 5,
    (1, 0): 0, (1, 1): None, (1, 2): 1,
    (2, 0): 6, (2, 1): 3, (2, 2): 7,
}


def resblock_kernel(x_ref, w1_ref, b1_ref, w2_ref, b2_ref, mask_ref,
                    o_ref, yp_ref, col_ref, *, W, PAD):
    """One block of images per grid step; channels-first, spatial (and packed batch)
    flattened on the lane axis.

    x_ref:    (1, C, L)            f32   input block (L = Nb*H*W lanes, lane-dense)
    w1_ref:   (C_mid, C)           bf16  1x1 conv weight, BN1 scale folded in
    b1_ref:   (C_mid, 1)           f32   folded BN1 bias
    w2_ref:   (C, 9*C_mid)         bf16  3x3 conv weight ((kh,kw,c_mid)-major), BN2 folded
    b2_ref:   (C, 1)               f32   folded BN2 bias
    mask_ref: (8, L)               f32   h/w edge masks (see _TAP_MASK_ROW)
    o_ref:    (1, C, L)            f32   output block
    yp_ref:   (C_mid, L + 2*PAD)   f32   conv1 activation with lane-aligned halo
    col_ref:  (9*C_mid, L)         bf16  im2col patch matrix (MXU operand)
    """
    C_mid = w1_ref.shape[0]
    L = x_ref.shape[2]

    x = x_ref[0]                                            # (C, L) f32 identity path

    # ---- conv1 (1x1) + folded BN1 + LeakyReLU(0.1): bf16 MXU operands, f32 acc ----
    z1 = jnp.dot(w1_ref[...], x.astype(jnp.bfloat16),
                 preferred_element_type=jnp.float32)        # (C_mid, L)
    y1 = z1 + b1_ref[...]
    y1 = jnp.where(y1 > 0, y1, LEAKY_SLOPE * y1)

    # ---- halo handling: zero ONLY the two lane-aligned halo strips, every step ----
    # (interior is fully overwritten below; do not gate on program_id — megacore)
    yp_ref[:, :PAD] = jnp.zeros((C_mid, PAD), jnp.float32)
    yp_ref[:, PAD + L:PAD + L + PAD] = jnp.zeros((C_mid, PAD), jnp.float32)
    yp_ref[:, PAD:PAD + L] = y1                             # lane-aligned unmasked store

    # ---- im2col: 9 lane-shifted taps, masked in f32, stored as bf16 ----
    # Out-of-image taps (conv padding=1 and image boundaries inside a packed block)
    # are zeroed by the precomputed h/w edge masks.
    for kh in range(KH):
        for kw in range(KW):
            t = kh * KW + kw
            shift = (kh - 1) * W + (kw - 1)
            if shift == 0:
                slab = y1                                   # center tap: reuse live value
            else:
                slab = yp_ref[:, PAD + shift:PAD + shift + L]
            row = _TAP_MASK_ROW[(kh, kw)]
            if row is not None:
                slab = slab * mask_ref[row:row + 1, :]      # f32 arithmetic (v5e-friendly)
            col_ref[t * C_mid:(t + 1) * C_mid, :] = slab.astype(jnp.bfloat16)

    # ---- conv2 (3x3) as ONE MXU contraction over 9*C_mid + folded BN2 + LeakyReLU ----
    z2 = jnp.dot(w2_ref[...], col_ref[...],
                 preferred_element_type=jnp.float32)        # (C, L)
    y2 = z2 + b2_ref[...]
    y2 = jnp.where(y2 > 0, y2, LEAKY_SLOPE * y2)

    # ---- residual add (f32); lane-dense store (last dim = L, multiple of 128) ----
    o_ref[0] = (x + y2).astype(o_ref.dtype)


def _fold_bn(w_oihw, gamma, beta, mean, var, eps):
    """Fold inference BatchNorm (running stats) into conv weight/bias."""
    scale = gamma / jnp.sqrt(var + eps)                     # (C_out,)
    w = w_oihw * scale[:, None, None, None]
    b = beta - mean * scale
    return w, b


def _images_per_block(N, HW, target_lanes=2048):
    """Pack several images onto the lane axis when HW is small, but keep >= 2 grid
    steps when N allows (v7x megacore).  On 1-TC chips extra steps are just a loop."""
    nb = max(1, target_lanes // HW)
    nb = min(nb, N)
    if N >= 2:
        nb = min(nb, N // 2)
    nb = max(nb, 1)
    while N % nb != 0:
        nb -= 1
    return nb


def res_block(x_nchw, params, eps=1e-5):
    """x_nchw: (N, C, H, W) f32.  params: conv/BN tensors in PyTorch layouts."""
    (w1, g1, be1, m1, v1, w2, g2, be2, m2, v2) = params
    N, C, H, W = x_nchw.shape
    C_mid = w1.shape[0]
    HW = H * W

    w1f, b1f = _fold_bn(w1, g1, be1, m1, v1, eps)           # (C_mid, C, 1, 1), (C_mid,)
    w2f, b2f = _fold_bn(w2, g2, be2, m2, v2, eps)           # (C, C_mid, 3, 3), (C,)

    w1_mat = w1f.reshape(C_mid, C).astype(jnp.bfloat16)                          # (C_mid, C)
    w2_mat = jnp.transpose(w2f, (0, 2, 3, 1)).reshape(
        C, KH * KW * C_mid).astype(jnp.bfloat16)                                 # (C, 9*C_mid)
    b1_col = b1f.reshape(C_mid, 1).astype(jnp.float32)
    b2_col = b2f.reshape(C, 1).astype(jnp.float32)

    nb = _images_per_block(N, HW)            # images packed per grid step
    n_blocks = N // nb
    L = nb * HW                              # lane extent per step
    PAD = ((W + 1 + 127) // 128) * 128       # lane-aligned halo, >= W+1

    # h/w edge masks over the packed lane axis (periodic per image).
    p = jnp.arange(L, dtype=jnp.int32)
    w_idx = p % W
    h_idx = (p % HW) // W
    mw0 = w_idx != 0
    mwl = w_idx != W - 1
    mh0 = h_idx != 0
    mhl = h_idx != H - 1
    masks = jnp.stack([mw0, mwl, mh0, mhl,
                       mh0 & mw0, mh0 & mwl, mhl & mw0, mhl & mwl]).astype(jnp.float32)

    # Lane-dense input layout: (n_blocks, C, L).  For nb == 1 this is a free
    # metadata reshape; for nb > 1 it is a one-time batch-major -> channel-major
    # transpose in the wrapper (amortized by the widened MXU lanes).
    x_flat = x_nchw.reshape(N, C, HW).astype(jnp.float32)
    if nb > 1:
        x_flat = (x_flat.reshape(n_blocks, nb, C, HW)
                  .transpose(0, 2, 1, 3)
                  .reshape(n_blocks, C, L))

    kernel = functools.partial(resblock_kernel, W=W, PAD=PAD)

    # VMEM working-set estimate (double-buffered I/O + scratch + weights/masks x2).
    vmem_est = (2 * 2 * C * L * 4
                + C_mid * (L + 2 * PAD) * 4
                + 9 * C_mid * L * 2
                + 2 * ((C_mid * C + C * 9 * C_mid) * 2 + (C_mid + C) * 4 + 8 * L * 4))
    cp_kwargs = dict(dimension_semantics=("parallel",))
    if vmem_est > 32 * 1024 * 1024:
        # TODO(synk): on v7x (64 MiB VMEM) shrink L (halo'd spatial row tiles) instead
        #             of raising the limit past ~48 MiB.
        cp_kwargs["vmem_limit_bytes"] = int(min(vmem_est * 3 // 2, 110 * 1024 * 1024))

    out = pl.pallas_call(
        kernel,
        out_shape=jax.ShapeDtypeStruct((n_blocks, C, L), jnp.float32),
        grid_spec=pltpu.PrefetchScalarGridSpec(
            num_scalar_prefetch=0,
            grid=(n_blocks,),
            in_specs=[
                pl.BlockSpec((1, C, L), lambda n: (n, 0, 0)),
                pl.BlockSpec((C_mid, C), lambda n: (0, 0)),
                pl.BlockSpec((C_mid, 1), lambda n: (0, 0)),
                pl.BlockSpec((C, KH * KW * C_mid), lambda n: (0, 0)),
                pl.BlockSpec((C, 1), lambda n: (0, 0)),
                pl.BlockSpec((8, L), lambda n: (0, 0)),
            ],
            out_specs=pl.BlockSpec((1, C, L), lambda n: (n, 0, 0)),
            scratch_shapes=[
                pltpu.VMEM((C_mid, L + 2 * PAD), jnp.float32),     # padded conv1 act
                pltpu.VMEM((KH * KW * C_mid, L), jnp.bfloat16),    # bf16 im2col matrix
            ],
        ),
        compiler_params=pltpu.CompilerParams(**cp_kwargs),
    )(x_flat, w1_mat, b1_col, w2_mat, b2_col, masks)

    if nb > 1:
        out = (out.reshape(n_blocks, C, nb, HW)
               .transpose(0, 2, 1, 3)
               .reshape(N, C, H, W))
    else:
        out = out.reshape(N, C, H, W)
    return out


def _reference(x, params, eps=1e-5):
    (w1, g1, be1, m1, v1, w2, g2, be2, m2, v2) = params

    def convblock(h, w, gamma, beta, mean, var, pad):
        y = jax.lax.conv_general_dilated(
            h, w, window_strides=(1, 1), padding=((pad, pad), (pad, pad)),
            dimension_numbers=("NCHW", "OIHW", "NCHW"))
        scale = gamma / jnp.sqrt(var + eps)
        y = y * scale[None, :, None, None] + (beta - mean * scale)[None, :, None, None]
        return jnp.where(y > 0, y, LEAKY_SLOPE * y)

    h = convblock(x, w1, g1, be1, m1, v1, 0)
    h = convblock(h, w2, g2, be2, m2, v2, 1)
    return x + h


if __name__ == "__main__":
    key = jax.random.PRNGKey(0)
    keys = jax.random.split(key, 12)

    N, C, H, W = 2, 4, 16, 16     # ResBlock(channels=4): conv1 4->2 (1x1), conv2 2->4 (3x3)
    C_mid = C // 2

    x = jax.random.normal(keys[0], (N, C, H, W), dtype=jnp.float32)

    # Deterministic synthetic parameters in PyTorch layouts (Conv2d weight = OIHW).
    w1 = 0.3 * jax.random.normal(keys[1], (C_mid, C, 1, 1), dtype=jnp.float32)
    g1 = 1.0 + 0.1 * jax.random.normal(keys[2], (C_mid,), dtype=jnp.float32)
    be1 = 0.1 * jax.random.normal(keys[3], (C_mid,), dtype=jnp.float32)
    m1 = 0.1 * jax.random.normal(keys[4], (C_mid,), dtype=jnp.float32)
    v1 = jnp.abs(1.0 + 0.1 * jax.random.normal(keys[5], (C_mid,), dtype=jnp.float32))

    w2 = 0.2 * jax.random.normal(keys[6], (C, C_mid, KH, KW), dtype=jnp.float32)
    g2 = 1.0 + 0.1 * jax.random.normal(keys[7], (C,), dtype=jnp.float32)
    be2 = 0.1 * jax.random.normal(keys[8], (C,), dtype=jnp.float32)
    m2 = 0.1 * jax.random.normal(keys[9], (C,), dtype=jnp.float32)
    v2 = jnp.abs(1.0 + 0.1 * jax.random.normal(keys[10], (C,), dtype=jnp.float32))

    params = (w1, g1, be1, m1, v1, w2, g2, be2, m2, v2)

    # --- main check (N=2 -> one image per step, 2 grid steps) ---
    out = jax.block_until_ready(res_block(x, params))
    ref = _reference(x, params)
    assert out.shape == (N, C, H, W)
    max_err = float(jnp.max(jnp.abs(out - ref)))
    # bf16 matmul operands with f32 accumulation -> loosened tolerance vs f32 reference.
    assert jnp.allclose(out, ref, atol=3e-2, rtol=3e-2), f"mismatch, max|err|={max_err}"

    # --- batched-lane path check (N=4 -> 2 images packed per step, 2 grid steps) ---
    x4 = jax.random.normal(keys[11], (4, C, H, W), dtype=jnp.float32)
    out4 = jax.block_until_ready(res_block(x4, params))
    ref4 = _reference(x4, params)
    max_err4 = float(jnp.max(jnp.abs(out4 - ref4)))
    assert jnp.allclose(out4, ref4, atol=3e-2, rtol=3e-2), f"batched mismatch, max|err|={max_err4}"

    print("KERNEL_OK")
</pallas_src>

<mosaic_0001>
module attributes {stable_mosaic.version = 11 : i64} {
  func.func @resblock_kernel(%arg0: i32, %arg1: memref<1x4x256xf32, #tpu.memory_space<vmem>>, %arg2: memref<2x4xbf16, #tpu.memory_space<vmem>>, %arg3: memref<2x1xf32, #tpu.memory_space<vmem>>, %arg4: memref<4x18xbf16, #tpu.memory_space<vmem>>, %arg5: memref<4x1xf32, #tpu.memory_space<vmem>>, %arg6: memref<8x256xf32, #tpu.memory_space<vmem>>, %arg7: memref<1x4x256xf32, #tpu.memory_space<vmem>>, %arg8: memref<2x512xf32, #tpu.memory_space<vmem>>, %arg9: memref<18x256xbf16, #tpu.memory_space<vmem>>) attributes {dimension_semantics = [#tpu.dimension_semantics<parallel>], iteration_bounds = array<i64: 2>, scalar_prefetch = 0 : i64, scratch_operands = 2 : i64, tpu.core_type = #tpu.core_type<tc>, window_params = [{transform_indices = @transform_0, window_bounds = array<i64: 1, 4, 256>}, {pipeline_mode = #tpu.pipeline_mode<synchronous>, transform_indices = @transform_1, window_bounds = array<i64: 2, 4>}, {pipeline_mode = #tpu.pipeline_mode<synchronous>, transform_indices = @transform_2, window_bounds = array<i64: 2, 1>}, {pipeline_mode = #tpu.pipeline_mode<synchronous>, transform_indices = @transform_3, window_bounds = array<i64: 4, 18>}, {pipeline_mode = #tpu.pipeline_mode<synchronous>, transform_indices = @transform_4, window_bounds = array<i64: 4, 1>}, {pipeline_mode = #tpu.pipeline_mode<synchronous>, transform_indices = @transform_5, window_bounds = array<i64: 8, 256>}, {transform_indices = @transform_6, window_bounds = array<i64: 1, 4, 256>}]} {
    %c0 = arith.constant 0 : index
    %c0_0 = arith.constant 0 : index
    %c0_1 = arith.constant 0 : index
    %0 = vector.load %arg1[%c0, %c0_0, %c0_1] : memref<1x4x256xf32, #tpu.memory_space<vmem>>, vector<1x4x256xf32>
    %1 = vector.shape_cast %0 : vector<1x4x256xf32> to vector<4x256xf32>
    %c0_2 = arith.constant 0 : index
    %c0_3 = arith.constant 0 : index
    %2 = vector.load %arg2[%c0_2, %c0_3] : memref<2x4xbf16, #tpu.memory_space<vmem>>, vector<2x4xbf16>
    %3 = arith.truncf %1 : vector<4x256xf32> to vector<4x256xbf16>
    %cst = arith.constant dense<0.000000e+00> : vector<2x256xf32>
    %4 = tpu.matmul %2, %3, %cst {dimension_numbers = #tpu.dot_dimension_numbers<[1], [0], [0], [1], [0, 0, 1, 1], [], []>} : vector<2x4xbf16>, vector<4x256xbf16>, vector<2x256xf32> -> vector<2x256xf32>
    %c0_4 = arith.constant 0 : index
    %c0_5 = arith.constant 0 : index
    %5 = vector.load %arg3[%c0_4, %c0_5] : memref<2x1xf32, #tpu.memory_space<vmem>>, vector<2x1xf32>
    %6 = vector.broadcast %5 : vector<2x1xf32> to vector<2x256xf32>
    %7 = arith.addf %4, %6 : vector<2x256xf32>
    %cst_6 = arith.constant 0.000000e+00 : f32
    %8 = vector.broadcast %cst_6 : f32 to vector<2x256xf32>
    %9 = arith.cmpf ogt, %7, %8 : vector<2x256xf32>
    %cst_7 = arith.constant 1.000000e-01 : f32
    %10 = vector.broadcast %cst_7 : f32 to vector<2x256xf32>
    %11 = arith.mulf %10, %7 : vector<2x256xf32>
    %12 = arith.select %9, %7, %11 : vector<2x256xi1>, vector<2x256xf32>
    %cst_8 = arith.constant 0.000000e+00 : f32
    %13 = vector.broadcast %cst_8 : f32 to vector<2x128xf32>
    %c0_9 = arith.constant 0 : index
    %c0_10 = arith.constant 0 : index
    %14 = vector.load %arg8[%c0_9, %c0_10] : memref<2x512xf32, #tpu.memory_space<vmem>>, vector<2x128xf32>
    tpu.vector_store %arg8[%c0_9, %c0_10], %13 {strides = array<i32>} : memref<2x512xf32, #tpu.memory_space<vmem>>, vector<2x128xf32>,
    %cst_11 = arith.constant 0.000000e+00 : f32
    %15 = vector.broadcast %cst_11 : f32 to vector<2x128xf32>
    %c0_12 = arith.constant 0 : index
    %c384 = arith.constant 384 : index
    %16 = vector.load %arg8[%c0_12, %c384] : memref<2x512xf32, #tpu.memory_space<vmem>>, vector<2x128xf32>
    tpu.vector_store %arg8[%c0_12, %c384], %15 {strides = array<i32>} : memref<2x512xf32, #tpu.memory_space<vmem>>, vector<2x128xf32>,
    %c0_13 = arith.constant 0 : index
    %c128 = arith.constant 128 : index
    %17 = vector.load %arg8[%c0_13, %c128] : memref<2x512xf32, #tpu.memory_space<vmem>>, vector<2x256xf32>
    tpu.vector_store %arg8[%c0_13, %c128], %12 {strides = array<i32>} : memref<2x512xf32, #tpu.memory_space<vmem>>, vector<2x256xf32>,
    %c0_14 = arith.constant 0 : index
    %c111 = arith.constant 111 : index
    %18 = vector.load %arg8[%c0_14, %c111] : memref<2x512xf32, #tpu.memory_space<vmem>>, vector<2x256xf32>
    %c4 = arith.constant 4 : index
    %c0_15 = arith.constant 0 : index
    %19 = vector.load %arg6[%c4, %c0_15] : memref<8x256xf32, #tpu.memory_space<vmem>>, vector<1x256xf32>
    %20 = vector.broadcast %19 : vector<1x256xf32> to vector<2x256xf32>
    %21 = arith.mulf %18, %20 : vector<2x256xf32>
    %22 = arith.truncf %21 : vector<2x256xf32> to vector<2x256xbf16>
    %c0_16 = arith.constant 0 : index
    %c0_17 = arith.constant 0 : index
    %23 = vector.load %arg9[%c0_16, %c0_17] : memref<18x256xbf16, #tpu.memory_space<vmem>>, vector<2x256xbf16>
    tpu.vector_store %arg9[%c0_16, %c0_17], %22 {strides = array<i32>} : memref<18x256xbf16, #tpu.memory_space<vmem>>, vector<2x256xbf16>,
    %c0_18 = arith.constant 0 : index
    %c112 = arith.constant 112 : index
    %24 = vector.load %arg8[%c0_18, %c112] : memref<2x512xf32, #tpu.memory_space<vmem>>, vector<2x256xf32>
    %c2 = arith.constant 2 : index
    %c0_19 = arith.constant 0 : index
    %25 = vector.load %arg6[%c2, %c0_19] : memref<8x256xf32, #tpu.memory_space<vmem>>, vector<1x256xf32>
    %26 = vector.broadcast %25 : vector<1x256xf32> to vector<2x256xf32>
    %27 = arith.mulf %24, %26 : vector<2x256xf32>
    %28 = arith.truncf %27 : vector<2x256xf32> to vector<2x256xbf16>
    %c2_20 = arith.constant 2 : index
    %c0_21 = arith.constant 0 : index
    %29 = vector.load %arg9[%c2_20, %c0_21] : memref<18x256xbf16, #tpu.memory_space<vmem>>, vector<2x256xbf16>
    tpu.vector_store %arg9[%c2_20, %c0_21], %28 {strides = array<i32>} : memref<18x256xbf16, #tpu.memory_space<vmem>>, vector<2x256xbf16>,
    %c0_22 = arith.constant 0 : index
    %c113 = arith.constant 113 : index
    %30 = vector.load %arg8[%c0_22, %c113] : memref<2x512xf32, #tpu.memory_space<vmem>>, vector<2x256xf32>
    %c5 = arith.constant 5 : index
    %c0_23 = arith.constant 0 : index
    %31 = vector.load %arg6[%c5, %c0_23] : memref<8x256xf32, #tpu.memory_space<vmem>>, vector<1x256xf32>
    %32 = vector.broadcast %31 : vector<1x256xf32> to vector<2x256xf32>
    %33 = arith.mulf %30, %32 : vector<2x256xf32>
    %34 = arith.truncf %33 : vector<2x256xf32> to vector<2x256xbf16>
    %c4_24 = arith.constant 4 : index
    %c0_25 = arith.constant 0 : index
    %35 = vector.load %arg9[%c4_24, %c0_25] : memref<18x256xbf16, #tpu.memory_space<vmem>>, vector<2x256xbf16>
    tpu.vector_store %arg9[%c4_24, %c0_25], %34 {strides = array<i32>} : memref<18x256xbf16, #tpu.memory_space<vmem>>, vector<2x256xbf16>,
    %c0_26 = arith.constant 0 : index
    %c127 = arith.constant 127 : index
    %36 = vector.load %arg8[%c0_26, %c127] : memref<2x512xf32, #tpu.memory_space<vmem>>, vector<2x256xf32>
    %c0_27 = arith.constant 0 : index
    %c0_28 = arith.constant 0 : index
    %37 = vector.load %arg6[%c0_27, %c0_28] : memref<8x256xf32, #tpu.memory_space<vmem>>, vector<1x256xf32>
    %38 = vector.broadcast %37 : vector<1x256xf32> to vector<2x256xf32>
    %39 = arith.mulf %36, %38 : vector<2x256xf32>
    %40 = arith.truncf %39 : vector<2x256xf32> to vector<2x256xbf16>
    %c6 = arith.constant 6 : index
    %c0_29 = arith.constant 0 : index
    %41 = vector.load %arg9[%c6, %c0_29] : memref<18x256xbf16, #tpu.memory_space<vmem>>, vector<2x256xbf16>
    tpu.vector_store %arg9[%c6, %c0_29], %40 {strides = array<i32>} : memref<18x256xbf16, #tpu.memory_space<vmem>>, vector<2x256xbf16>,
    %42 = arith.truncf %12 : vector<2x256xf32> to vector<2x256xbf16>
    %c8 = arith.constant 8 : index
    %c0_30 = arith.constant 0 : index
    %43 = vector.load %arg9[%c8, %c0_30] : memref<18x256xbf16, #tpu.memory_space<vmem>>, vector<2x256xbf16>
    tpu.vector_store %arg9[%c8, %c0_30], %42 {strides = array<i32>} : memref<18x256xbf16, #tpu.memory_space<vmem>>, vector<2x256xbf16>,
    %c0_31 = arith.constant 0 : index
    %c129 = arith.constant 129 : index
    %44 = vector.load %arg8[%c0_31, %c129] : memref<2x512xf32, #tpu.memory_space<vmem>>, vector<2x256xf32>
    %c1 = arith.constant 1 : index
    %c0_32 = arith.constant 0 : index
    %45 = vector.load %arg6[%c1, %c0_32] : memref<8x256xf32, #tpu.memory_space<vmem>>, vector<1x256xf32>
    %46 = vector.broadcast %45 : vector<1x256xf32> to vector<2x256xf32>
    %47 = arith.mulf %44, %46 : vector<2x256xf32>
    %48 = arith.truncf %47 : vector<2x256xf32> to vector<2x256xbf16>
    %c10 = arith.constant 10 : index
    %c0_33 = arith.constant 0 : index
    %49 = vector.load %arg9[%c10, %c0_33] : memref<18x256xbf16, #tpu.memory_space<vmem>>, vector<2x256xbf16>
    tpu.vector_store %arg9[%c10, %c0_33], %48 {strides = array<i32>} : memref<18x256xbf16, #tpu.memory_space<vmem>>, vector<2x256xbf16>,
    %c0_34 = arith.constant 0 : index
    %c143 = arith.constant 143 : index
    %50 = vector.load %arg8[%c0_34, %c143] : memref<2x512xf32, #tpu.memory_space<vmem>>, vector<2x256xf32>
    %c6_35 = arith.constant 6 : index
    %c0_36 = arith.constant 0 : index
    %51 = vector.load %arg6[%c6_35, %c0_36] : memref<8x256xf32, #tpu.memory_space<vmem>>, vector<1x256xf32>
    %52 = vector.broadcast %51 : vector<1x256xf32> to vector<2x256xf32>
    %53 = arith.mulf %50, %52 : vector<2x256xf32>
    %54 = arith.truncf %53 : vector<2x256xf32> to vector<2x256xbf16>
    %c12 = arith.constant 12 : index
    %c0_37 = arith.constant 0 : index
    %55 = vector.load %arg9[%c12, %c0_37] : memref<18x256xbf16, #tpu.memory_space<vmem>>, vector<2x256xbf16>
    tpu.vector_store %arg9[%c12, %c0_37], %54 {strides = array<i32>} : memref<18x256xbf16, #tpu.memory_space<vmem>>, vector<2x256xbf16>,
    %c0_38 = arith.constant 0 : index
    %c144 = arith.constant 144 : index
    %56 = vector.load %arg8[%c0_38, %c144] : memref<2x512xf32, #tpu.memory_space<vmem>>, vector<2x256xf32>
    %c3 = arith.constant 3 : index
    %c0_39 = arith.constant 0 : index
    %57 = vector.load %arg6[%c3, %c0_39] : memref<8x256xf32, #tpu.memory_space<vmem>>, vector<1x256xf32>
    %58 = vector.broadcast %57 : vector<1x256xf32> to vector<2x256xf32>
    %59 = arith.mulf %56, %58 : vector<2x256xf32>
    %60 = arith.truncf %59 : vector<2x256xf32> to vector<2x256xbf16>
    %c14 = arith.constant 14 : index
    %c0_40 = arith.constant 0 : index
    %61 = vector.load %arg9[%c14, %c0_40] : memref<18x256xbf16, #tpu.memory_space<vmem>>, vector<2x256xbf16>
    tpu.vector_store %arg9[%c14, %c0_40], %60 {strides = array<i32>} : memref<18x256xbf16, #tpu.memory_space<vmem>>, vector<2x256xbf16>,
    %c0_41 = arith.constant 0 : index
    %c145 = arith.constant 145 : index
    %62 = vector.load %arg8[%c0_41, %c145] : memref<2x512xf32, #tpu.memory_space<vmem>>, vector<2x256xf32>
    %c7 = arith.constant 7 : index
    %c0_42 = arith.constant 0 : index
    %63 = vector.load %arg6[%c7, %c0_42] : memref<8x256xf32, #tpu.memory_space<vmem>>, vector<1x256xf32>
    %64 = vector.broadcast %63 : vector<1x256xf32> to vector<2x256xf32>
    %65 = arith.mulf %62, %64 : vector<2x256xf32>
    %66 = arith.truncf %65 : vector<2x256xf32> to vector<2x256xbf16>
    %c16 = arith.constant 16 : index
    %c0_43 = arith.constant 0 : index
    %67 = vector.load %arg9[%c16, %c0_43] : memref<18x256xbf16, #tpu.memory_space<vmem>>, vector<2x256xbf16>
    tpu.vector_store %arg9[%c16, %c0_43], %66 {strides = array<i32>} : memref<18x256xbf16, #tpu.memory_space<vmem>>, vector<2x256xbf16>,
    %c0_44 = arith.constant 0 : index
    %c0_45 = arith.constant 0 : index
    %68 = vector.load %arg4[%c0_44, %c0_45] : memref<4x18xbf16, #tpu.memory_space<vmem>>, vector<4x18xbf16>
    %c0_46 = arith.constant 0 : index
    %c0_47 = arith.constant 0 : index
    %69 = vector.load %arg9[%c0_46, %c0_47] : memref<18x256xbf16, #tpu.memory_space<vmem>>, vector<18x256xbf16>
    %cst_48 = arith.constant dense<0.000000e+00> : vector<4x256xf32>
    %70 = tpu.matmul %68, %69, %cst_48 {dimension_numbers = #tpu.dot_dimension_numbers<[1], [0], [0], [1], [0, 0, 1, 1], [], []>} : vector<4x18xbf16>, vector<18x256xbf16>, vector<4x256xf32> -> vector<4x256xf32>
    %c0_49 = arith.constant 0 : index
    %c0_50 = arith.constant 0 : index
    %71 = vector.load %arg5[%c0_49, %c0_50] : memref<4x1xf32, #tpu.memory_space<vmem>>, vector<4x1xf32>
    %72 = vector.broadcast %71 : vector<4x1xf32> to vector<4x256xf32>
    %73 = arith.addf %70, %72 : vector<4x256xf32>
    %cst_51 = arith.constant 0.000000e+00 : f32
    %74 = vector.broadcast %cst_51 : f32 to vector<4x256xf32>
    %75 = arith.cmpf ogt, %73, %74 : vector<4x256xf32>
    %cst_52 = arith.constant 1.000000e-01 : f32
    %76 = vector.broadcast %cst_52 : f32 to vector<4x256xf32>
    %77 = arith.mulf %76, %73 : vector<4x256xf32>
    %78 = arith.select %75, %73, %77 : vector<4x256xi1>, vector<4x256xf32>
    %79 = arith.addf %1, %78 : vector<4x256xf32>
    %c0_53 = arith.constant 0 : index
    %c0_54 = arith.constant 0 : index
    %c0_55 = arith.constant 0 : index
    %80 = vector.load %arg7[%c0_53, %c0_54, %c0_55] : memref<1x4x256xf32, #tpu.memory_space<vmem>>, vector<1x4x256xf32>
    %81 = vector.shape_cast %80 : vector<1x4x256xf32> to vector<4x256xf32>
    %82 = vector.shape_cast %79 : vector<4x256xf32> to vector<1x4x256xf32>
    tpu.vector_store %arg7[%c0_53, %c0_54, %c0_55], %82 {strides = array<i32>} : memref<1x4x256xf32, #tpu.memory_space<vmem>>, vector<1x4x256xf32>,
    return
  }
  func.func @transform_0(%arg0: i32) -> (i32, i32, i32) {
    %c0_i32 = arith.constant 0 : i32
    %c0_i32_0 = arith.constant 0 : i32
    %c0_i32_1 = arith.constant 0 : i32
    return %arg0, %c0_i32, %c0_i32_0 : i32, i32, i32
  }
  func.func @transform_1(%arg0: i32) -> (i32, i32) {
    %c0_i32 = arith.constant 0 : i32
    %c0_i32_0 = arith.constant 0 : i32
    %c0_i32_1 = arith.constant 0 : i32
    return %c0_i32, %c0_i32_0 : i32, i32
  }
  func.func @transform_2(%arg0: i32) -> (i32, i32) {
    %c0_i32 = arith.constant 0 : i32
    %c0_i32_0 = arith.constant 0 : i32
    %c0_i32_1 = arith.constant 0 : i32
    return %c0_i32, %c0_i32_0 : i32, i32
  }
  func.func @transform_3(%arg0: i32) -> (i32, i32) {
    %c0_i32 = arith.constant 0 : i32
    %c0_i32_0 = arith.constant 0 : i32
    %c0_i32_1 = arith.constant 0 : i32
    return %c0_i32, %c0_i32_0 : i32, i32
  }
  func.func @transform_4(%arg0: i32) -> (i32, i32) {
    %c0_i32 = arith.constant 0 : i32
    %c0_i32_0 = arith.constant 0 : i32
    %c0_i32_1 = arith.constant 0 : i32
    return %c0_i32, %c0_i32_0 : i32, i32
  }
  func.func @transform_5(%arg0: i32) -> (i32, i32) {
    %c0_i32 = arith.constant 0 : i32
    %c0_i32_0 = arith.constant 0 : i32
    %c0_i32_1 = arith.constant 0 : i32
    return %c0_i32, %c0_i32_0 : i32, i32
  }
  func.func @transform_6(%arg0: i32) -> (i32, i32, i32) {
    %c0_i32 = arith.constant 0 : i32
    %c0_i32_0 = arith.constant 0 : i32
    %c0_i32_1 = arith.constant 0 : i32
    return %arg0, %c0_i32, %c0_i32_0 : i32, i32, i32
  }
}

</mosaic_0001>

<llo_original>
// kernel: tpu_custom_call.1
$region0: #{tpu_custom_call.1}
  #allocation0 [shape = 'u32[]', space=smem, size = 0x4, offset = 0x4, fixed_abs, tag = 'smem constant byte address 0x4 - core index']
  #allocation1 [shape = 'u32[144,128]{1,0:T(1,128)}', space=vmem, size = 0x12000, scoped, tag = 'internal scratch']
  #allocation2 [shape = 'f32[2,512]{1,0:T(2,128)}', space=vmem, size = 0x1000, scoped, tag = 'scratch operand']
  #allocation3 [shape = 'bf16[18,256]{1,0:T(8,128)(2,1)}', space=vmem, size = 0x3000, scoped, tag = 'scratch operand']
  %s0 = inlined_call_operand.hbm [shape: f32[2,4,256], index: 0, kind: input, shape index: {}]
  %s1 = inlined_call_operand.vmem [shape: bf16[2,4], index: 1, kind: input, shape index: {}]
  %s2 = inlined_call_operand.vmem [shape: f32[2,1], index: 2, kind: input, shape index: {}]
  %s3 = inlined_call_operand.vmem [shape: bf16[4,18], index: 3, kind: input, shape index: {}]
  %s4 = inlined_call_operand.vmem [shape: f32[4,1], index: 4, kind: input, shape index: {}]
  %s5 = inlined_call_operand.vmem [shape: f32[8,256], index: 5, kind: input, shape index: {}]
  %s6 = inlined_call_operand.hbm [shape: f32[2,4,256], index: 6, kind: output, shape index: {}]
  %s7 = sld [smem:[#allocation0]]
  $region61: #{tpu_custom_call.1} parent=0
    _
  %s9 = ssub.s32 1, %s7
  %s10 = scalar_select 0, %s9, %s7
  $region1: #{tpu_custom_call.1} parent=0
    #allocation4 [shape = 'u8[8192]{0}', space=vmem, size = 0x2000, scoped, tag = 'input window, operand 0']
    #allocation5 [shape = 's32[2]{0}', space=sflag, size = 0x8, scoped, tag = 'scoped memory for tpu_custom_call.1']
    #allocation6 [shape = 's32[2]{0}', space=sflag, size = 0x8, scoped, tag = 'scoped memory for tpu_custom_call.1']
    #allocation7 [shape = 'u8[8192]{0}', space=vmem, size = 0x2000, scoped, tag = 'output window, operand 0']
    %11 = vsyncpa [#allocation5], 0
    %s12 = scalar_lea.sflag [#allocation5], 1
    %13 = vsyncpa %s12, 0
    %14 = vsyncpa [#allocation6], 0
    %s15 = scalar_lea.sflag [#allocation6], 1
    %16 = vsyncpa %s15, 0
    loop: start=0, step=1, limit=4
    $region2: #{tpu_custom_call.1} parent=1 // loop_pre_header
      _
    $region3: #{tpu_custom_call.1} parent=1 // loop_header
      %s18 = sphi 0, %s22
      %p19 = scmp.ge.s32.totalorder %s18, 4
      %s28 = sphi 0, %s30
      %s31 = sphi 0, %s28
      %s32 = sphi 0, %s31
      %s48 = sphi 0, %s32
      %s52 = sphi 0, %s52
      %s54 = sphi 0, %s52
      %s55 = sphi 0, %s54
      %s69 = sphi 0, %s55
      %s73 = sphi 0, %s73
      %s75 = sphi 0, %s73
      %s76 = sphi 0, %s75
      %s90 = sphi 0, %s76
      %s94 = sphi 0, %s94
      %s96 = sphi 0, %s94
      %s97 = sphi 0, %s96
      %s111 = sphi 0, %s97
      %s115 = sphi 0, %s115
      %s117 = sphi 0, %s115
      %s118 = sphi 0, %s117
      %s132 = sphi 0, %s118
      %s136 = sphi 0, %s136
      %s138 = sphi 0, %s136
      %s139 = sphi 0, %s138
      %s153 = sphi 0, %s139
      %s159 = sphi 0, %s161
      %s162 = sphi 0, %s159
      %s163 = sphi 0, %s162
      %s179 = sphi 0, %s163
    $region4: #{tpu_custom_call.1} parent=1 // loop_header_branch
      %21 = sbr.rel (%p19) target = $region8
    $region5: #{tpu_custom_call.1} parent=1 // loop_body
      %s23 = ssub.s32 %s18, 1
      %s24 = ssub.s32 %s18, 2
      %s25 = sadd.s32 %s18, 1
      %s26 = ssub.s32 %s18, %s25
      %p27 = scmp.eq.s32.totalorder %s26, 0
      %s29 = sadd.s32 %s28, 1
      %s30 = scalar_select %p27, %s28, %s29
      %p33 = pneg %p27
      %p34 = scmp.eq.s32.totalorder %s18, 1
      %p35 = por %p33, %p34
      %p36 = scmp.ne.s32.totalorder %s28, %s31
      %p37 = scmp.eq.s32.totalorder %s18, 0
      %p38 = por %p36, %p37
      %p39 = scmp.ne.s32.totalorder %s28, %s31
      %p40 = scmp.eq.s32.totalorder %s23, 1
      %p41 = por %p39, %p40
      %p42 = scmp.ne.s32.totalorder %s31, %s32
      %p43 = scmp.eq.s32.totalorder %s23, 0
      %p44 = por %p42, %p43
      %p45 = scmp.ne.s32.totalorder %s31, %s32
      %p46 = scmp.eq.s32.totalorder %s24, 1
      %p47 = por %p45, %p46
      %p49 = scmp.ne.s32.totalorder %s32, %s48
      %p50 = scmp.eq.s32.totalorder %s24, 0
      %p51 = por %p49, %p50
      %s53 = sadd.s32 %s52, 1
      %p56 = scmp.eq.s32.totalorder %s18, 1
      %p57 = scmp.ne.s32.totalorder %s52, %s54
      %p58 = scmp.eq.s32.totalorder %s18, 0
      %p59 = por %p57, %p58
      %p60 = scmp.ne.s32.totalorder %s52, %s54
      %p61 = scmp.eq.s32.totalorder %s23, 1
      %p62 = por %p60, %p61
      %p63 = scmp.ne.s32.totalorder %s54, %s55
      %p64 = scmp.eq.s32.totalorder %s23, 0
      %p65 = por %p63, %p64
      %p66 = scmp.ne.s32.totalorder %s54, %s55
      %p67 = scmp.eq.s32.totalorder %s24, 1
      %p68 = por %p66, %p67
      %p70 = scmp.ne.s32.totalorder %s55, %s69
      %p71 = scmp.eq.s32.totalorder %s24, 0
      %p72 = por %p70, %p71
      %s74 = sadd.s32 %s73, 1
      %p77 = scmp.eq.s32.totalorder %s18, 1
      %p78 = scmp.ne.s32.totalorder %s73, %s75
      %p79 = scmp.eq.s32.totalorder %s18, 0
      %p80 = por %p78, %p79
      %p81 = scmp.ne.s32.totalorder %s73, %s75
      %p82 = scmp.eq.s32.totalorder %s23, 1
      %p83 = por %p81, %p82
      %p84 = scmp.ne.s32.totalorder %s75, %s76
      %p85 = scmp.eq.s32.totalorder %s23, 0
      %p86 = por %p84, %p85
      %p87 = scmp.ne.s32.totalorder %s75, %s76
      %p88 = scmp.eq.s32.totalorder %s24, 1
      %p89 = por %p87, %p88
      %p91 = scmp.ne.s32.totalorder %s76, %s90
      %p92 = scmp.eq.s32.totalorder %s24, 0
      %p93 = por %p91, %p92
      %s95 = sadd.s32 %s94, 1
      %p98 = scmp.eq.s32.totalorder %s18, 1
      %p99 = scmp.ne.s32.totalorder %s94, %s96
      %p100 = scmp.eq.s32.totalorder %s18, 0
      %p101 = por %p99, %p100
      %p102 = scmp.ne.s32.totalorder %s94, %s96
      %p103 = scmp.eq.s32.totalorder %s23, 1
      %p104 = por %p102, %p103
      %p105 = scmp.ne.s32.totalorder %s96, %s97
      %p106 = scmp.eq.s32.totalorder %s23, 0
      %p107 = por %p105, %p106
      %p108 = scmp.ne.s32.totalorder %s96, %s97
      %p109 = scmp.eq.s32.totalorder %s24, 1
      %p110 = por %p108, %p109
      %p112 = scmp.ne.s32.totalorder %s97, %s111
      %p113 = scmp.eq.s32.totalorder %s24, 0
      %p114 = por %p112, %p113
      %s116 = sadd.s32 %s115, 1
      %p119 = scmp.eq.s32.totalorder %s18, 1
      %p120 = scmp.ne.s32.totalorder %s115, %s117
      %p121 = scmp.eq.s32.totalorder %s18, 0
      %p122 = por %p120, %p121
      %p123 = scmp.ne.s32.totalorder %s115, %s117
      %p124 = scmp.eq.s32.totalorder %s23, 1
      %p125 = por %p123, %p124
      %p126 = scmp.ne.s32.totalorder %s117, %s118
      %p127 = scmp.eq.s32.totalorder %s23, 0
      %p128 = por %p126, %p127
      %p129 = scmp.ne.s32.totalorder %s117, %s118
      %p130 = scmp.eq.s32.totalorder %s24, 1
      %p131 = por %p129, %p130
      %p133 = scmp.ne.s32.totalorder %s118, %s132
      %p134 = scmp.eq.s32.totalorder %s24, 0
      %p135 = por %p133, %p134
      %s137 = sadd.s32 %s136, 1
      %p140 = scmp.eq.s32.totalorder %s18, 1
      %p141 = scmp.ne.s32.totalorder %s136, %s138
      %p142 = scmp.eq.s32.totalorder %s18, 0
      %p143 = por %p141, %p142
      %p144 = scmp.ne.s32.totalorder %s136, %s138
      %p145 = scmp.eq.s32.totalorder %s23, 1
      %p146 = por %p144, %p145
      %p147 = scmp.ne.s32.totalorder %s138, %s139
      %p148 = scmp.eq.s32.totalorder %s23, 0
      %p149 = por %p147, %p148
      %p150 = scmp.ne.s32.totalorder %s138, %s139
      %p151 = scmp.eq.s32.totalorder %s24, 1
      %p152 = por %p150, %p151
      %p154 = scmp.ne.s32.totalorder %s139, %s153
      %p155 = scmp.eq.s32.totalorder %s24, 0
      %p156 = por %p154, %p155
      %s157 = ssub.s32 %s18, %s25
      %p158 = scmp.eq.s32.totalorder %s157, 0
      %s160 = sadd.s32 %s159, 1
      %s161 = scalar_select %p158, %s159, %s160
      %p164 = pneg %p158
      %p165 = scmp.eq.s32.totalorder %s18, 1
      %p166 = por %p164, %p165
      %p167 = scmp.ne.s32.totalorder %s159, %s162
      %p168 = scmp.eq.s32.totalorder %s18, 0
      %p169 = por %p167, %p168
      %p170 = scmp.ne.s32.totalorder %s159, %s162
      %p171 = scmp.eq.s32.totalorder %s23, 1
      %p172 = por %p170, %p171
      %p173 = scmp.ne.s32.totalorder %s162, %s163
      %p174 = scmp.eq.s32.totalorder %s23, 0
      %p175 = por %p173, %p174
      %p176 = scmp.ne.s32.totalorder %s162, %s163
      %p177 = scmp.eq.s32.totalorder %s24, 1
      %p178 = por %p176, %p177
      %p180 = scmp.ne.s32.totalorder %s163, %s179
      %p181 = scmp.eq.s32.totalorder %s24, 0
      %p182 = por %p180, %p181
      %p183 = scmp.le.s32.totalorder 1, %s18
      %p184 = scmp.lt.s32.totalorder %s18, 3
      %p185 = pnand %p183, %p184
      %p186 = pneg %p185
      // Predicated region
      $region9: #{tpu_custom_call.1} parent=5 // pred_check
        _
      $region10: #{tpu_custom_call.1} parent=5 // pred_check_branch
        %188 = sbr.rel (%p185) target = $region12
      $region11: #{tpu_custom_call.1} parent=5 // pred_region
        %s189 = ssub.s32 %s18, 1
        // Predicated region
        $region13: #{tpu_custom_call.1} parent=11 // pred_check
          %p190 = pneg %p65
        $region14: #{tpu_custom_call.1} parent=11 // pred_check_branch
          %192 = sbr.rel (%p190) target = $region16
        $region15: #{tpu_custom_call.1} parent=11 // pred_region
          _
        $region16: #{tpu_custom_call.1} parent=11 // pred_fallthru
          _
        // Predicated region
        $region17: #{tpu_custom_call.1} parent=11 // pred_check
          %p193 = pneg %p86
        $region18: #{tpu_custom_call.1} parent=11 // pred_check_branch
          %195 = sbr.rel (%p193) target = $region20
        $region19: #{tpu_custom_call.1} parent=11 // pred_region
          _
        $region20: #{tpu_custom_call.1} parent=11 // pred_fallthru
          _
        // Predicated region
        $region21: #{tpu_custom_call.1} parent=11 // pred_check
          %p196 = pneg %p107
        $region22: #{tpu_custom_call.1} parent=11 // pred_check_branch
          %198 = sbr.rel (%p196) target = $region24
        $region23: #{tpu_custom_call.1} parent=11 // pred_region
          _
        $region24: #{tpu_custom_call.1} parent=11 // pred_fallthru
          _
        // Predicated region
        $region25: #{tpu_custom_call.1} parent=11 // pred_check
          %p199 = pneg %p128
        $region26: #{tpu_custom_call.1} parent=11 // pred_check_branch
          %201 = sbr.rel (%p199) target = $region28
        $region27: #{tpu_custom_call.1} parent=11 // pred_region
          _
        $region28: #{tpu_custom_call.1} parent=11 // pred_fallthru
          _
        // Predicated region
        $region29: #{tpu_custom_call.1} parent=11 // pred_check
          %p202 = pneg %p149
        $region30: #{tpu_custom_call.1} parent=11 // pred_check_branch
          %204 = sbr.rel (%p202) target = $region32
        $region31: #{tpu_custom_call.1} parent=11 // pred_region
          _
        $region32: #{tpu_custom_call.1} parent=11 // pred_fallthru
          _
      $region12: #{tpu_custom_call.1} parent=5 // pred_fallthru
        _
      %p205 = scmp.lt.s32.totalorder %s18, 2
      // Predicated region
      $region33: #{tpu_custom_call.1} parent=5 // pred_check
        %p206 = pneg %p205
      $region34: #{tpu_custom_call.1} parent=5 // pred_check_branch
        %208 = sbr.rel (%p206) target = $region36
      $region35: #{tpu_custom_call.1} parent=5 // pred_region
        // Predicated region
        $region37: #{tpu_custom_call.1} parent=35 // pred_check
          %p209 = pneg %p38
        $region38: #{tpu_custom_call.1} parent=35 // pred_check_branch
          %211 = sbr.rel (%p209) target = $region40
        $region39: #{tpu_custom_call.1} parent=35 // pred_region
          %s212 = sand.u32 %s28, 1
          %s213 = scalar_lea.sflag [#allocation5], %s212
          %s214 = sand.u32 %s28, 1
          %s215 = smul.addr %s214, 8
          %s216 = scalar_lea.vmem [#allocation4], %s215
          %s218 = ssub.s32 128, 128
          %219 = vsyncadd %s213, %s218
          %s220 = smul.addr %s18, 2
          %s221 = smul.addr %s220, 64
          %s222 = scalar_lea.hbm %s0, %s221
          %s224 = sshll.u32 %s216, 4
          %s225 = int_to_ptr.vmem [resolvable:$true] %s224
          %227 = dma.hbm_to_vmem [thread:$0]  %s222, 128, %s225, %s213
        $region40: #{tpu_custom_call.1} parent=35 // pred_fallthru
          _
      $region36: #{tpu_custom_call.1} parent=5 // pred_fallthru
        _
      %p228 = scmp.le.s32.totalorder 1, %s18
      %p229 = scmp.lt.s32.totalorder %s18, 3
      %p230 = pnand %p228, %p229
      %p231 = pneg %p230
      // Predicated region
      $region41: #{tpu_custom_call.1} parent=5 // pred_check
        _
      $region42: #{tpu_custom_call.1} parent=5 // pred_check_branch
        %233 = sbr.rel (%p230) target = $region44
      $region43: #{tpu_custom_call.1} parent=5 // pred_region
        %s234 = ssub.s32 %s18, 1
        %s235 = sand.u32 %s31, 1
        %s236 = scalar_lea.sflag [#allocation5], %s235
        %s237 = sand.u32 %s31, 1
        %s238 = smul.addr %s237, 8
        %s239 = scalar_lea.vmem [#allocation4], %s238
        // Predicated region
        $region45: #{tpu_custom_call.1} parent=43 // pred_check
          %p240 = pneg %p44
        $region46: #{tpu_custom_call.1} parent=43 // pred_check_branch
          %242 = sbr.rel (%p240) target = $region48
        $region47: #{tpu_custom_call.1} parent=43 // pred_region
          %243 = dma.done %s236, 128
        $region48: #{tpu_custom_call.1} parent=43 // pred_fallthru
          _
        %s244 = sand.u32 %s31, 1
        %s245 = scalar_lea.sflag [#allocation5], %s244
        %s246 = sand.u32 %s31, 1
        %s247 = smul.addr %s246, 8
        %s248 = scalar_lea.vmem [#allocation4], %s247
        %p249 = pneg %p44
        %p250 = pneg %p41
        %p251 = pneg %p65
        %p252 = pneg %p62
        %p253 = pneg %p86
        %p254 = pneg %p83
        %p255 = pneg %p107
        %p256 = pneg %p104
        %p257 = pneg %p128
        %p258 = pneg %p125
        %p259 = pneg %p149
        %p260 = pneg %p146
        %p261 = pneg %p175
        %p262 = pneg %p172
        %s263 = sand.u32 %s162, 1
        %s264 = scalar_lea.sflag [#allocation6], %s263
        %s265 = sand.u32 %s162, 1
        %s266 = smul.addr %s265, 8
        %s267 = scalar_lea.vmem [#allocation7], %s266
        %v269 = vld [vmem:[%s239] sm:$0xff]
        %v270 = vld [vmem:[%s1] sm:$0x1]
        %v272 = vcombine.high %v269, %v269
        %v274 = vpack.c.bf16 %v269, %v269
        %v275 = vpack.c.bf16 %v272, %v272
        %v276 = vld [vmem:[%s2] sm:$0x3]
        %278 = vset.pattern.permute.xlu0 0
        %279 = vperm.xlu0 %278, %v276
        %v280 = vpop.permute.xlu0 %279
        %vm282 = vcmask 31744
        %v284 = vsel %vm282, %v270, 0
        %vm286 = vcmask 1041408
        %v288 = vsel %vm286, %v274, 0
        %v291 = vsel %vm286, %v275, 0
        %293 = vmatprep.subr.bf16.mxu0 %v291
        %294 = vmatpush1.bf16.msra.mxu0 %v288
        %295 = vmatprep.subr.bf16.mxu0 0
        %296 = vmatpush1.bf16.msra.mxu0 0
        %297 = vmatprep.subr.bf16.mxu0 0
        %298 = vmatpush1.bf16.msra.mxu0 0
        %299 = vmatprep.subr.bf16.mxu0 0
        %300 = vmatpush1.bf16.msra.mxu0 0
        %301 = vmatprep.subr.bf16.mxu0 0
        %302 = vmatpush1.bf16.msra.mxu0 0
        %303 = vmatprep.subr.bf16.mxu0 0
        %304 = vmatpush1.bf16.msra.mxu0 0
        %305 = vmatprep.subr.bf16.mxu0 0
        %306 = vmatpush1.bf16.msra.mxu0 0
        %307 = vmatprep.subr.bf16.mxu0 0
        %308 = vmatpush1.bf16.msra.mxu0 0
        %309 = vmatprep.subr.bf16.mxu0 0
        %310 = vmatpush1.bf16.msra.mxu0 0
        %311 = vmatprep.subr.bf16.mxu0 0
        %312 = vmatpush1.bf16.msra.mxu0 0
        %313 = vmatprep.subr.bf16.mxu0 0
        %314 = vmatpush1.bf16.msra.mxu0 0
        %315 = vmatprep.subr.bf16.mxu0 0
        %316 = vmatpush1.bf16.msra.mxu0 0
        %317 = vmatprep.subr.bf16.mxu0 0
        %318 = vmatpush1.bf16.msra.mxu0 0
        %319 = vmatprep.subr.bf16.mxu0 0
        %320 = vmatpush1.bf16.msra.mxu0 0
        %321 = vmatprep.subr.bf16.mxu0 0
        %322 = vmatpush1.bf16.msra.mxu0 0
        %323 = vmatprep.subr.bf16.mxu0 0
        %324 = vmatpush1.bf16.msra.mxu0 0
        %325 = vmatprep.mubr.bf16.mxu0 0
        %326 = vmatmul.mubr.bf16.gmra.mrb[0].mxu0 %v284
        %v327 = vpop.f32.mrb[0].mxu0
        %v328 = vadd.f32 %v280, %v327
        %v329 = vpop.f32.mrb[0].mxu0
        %v330 = vadd.f32 %v280, %v329
        %v331 = vpop.f32.mrb[0].mxu0
        %v332 = vpop.f32.mrb[0].mxu0
        %333 = vdwg.mxu0
        %vm334 = vcmp.gt.f32.partialorder %v328, 0.0
        %vm335 = vcmp.gt.f32.partialorder %v330, 0.0
        %v336 = vmul.f32 %v328, 0.1
        %v337 = vmul.f32 %v330, 0.1
        %v338 = vsel %vm334, %v328, %v336
        %v339 = vsel %vm335, %v330, %v337
        %340 = vst [vmem:[#allocation2] sm:$0x3] 0.0
        %341 = vst [vmem:[#allocation2 + $0x6] sm:$0x3] 0.0
        %v344 = vcombine.low %v338, %v339
        %v346 = vunpack.c.l.s4 1983009808
        %v347 = vunpack.c.0.s8 %v346
        %v348 = vlaneseq
        %v349 = vshrl.u32 %v348, 7
        %v350 = vsub.s32 %v347, %v349
        %v351 = vrot.slane %v344, %v350
        %353 = vst [vmem:[#allocation2 + $0x2] sm:$0xf] %v351
        %v354 = vld [vmem:[#allocation2] sm:$0x3f]
        %s355 = scalar_lea.vmem %s5, 4
        %v356 = vld [vmem:[%s355] ss:$8 sm:$0x3]
        %v358 = vlaneseq
        %v359 = vshrl.u32 %v358, 7
        %v360 = vsub.s32 0, %v359
        %v361 = vrot.slane %v356, %v360
        %v362 = vlaneseq
        %v363 = vshrl.u32 %v362, 7
        %v364 = vsub.s32 1, %v363
        %v365 = vrot.slane %v356, %v364
        %v366 = vcombine.low %v361, %v365
        %v368 = vunpack.c.l.s4 1983009808
        %v369 = vunpack.c.0.s8 %v368
        %v370 = vlaneseq
        %v371 = vshrl.u32 %v370, 7
        %v372 = vsub.s32 %v369, %v371
        %v373 = vrot.slane %v366, %v372
        %374 = vrot.lane.b32.xlu0 %v373, 111
        %v375 = vpop.permute.xlu0 %374
        %v376 = vrot.slane %v375, 6
        %vm377 = vcmask 908288
        %v378 = vsel %vm377, %v376, %v375
        %v380 = vmul.f32 %v354, %v378
        %v382 = vcombine.high %v380, %v380
        %v384 = vunpack.c.l.s4 1983009808
        %v385 = vunpack.c.0.s8 %v384
        %v386 = vlaneseq
        %v387 = vshrl.u32 %v386, 7
        %v388 = vsub.s32 %v385, %v387
        %v389 = vrot.slane %v380, %v388
        %v391 = vunpack.c.l.s4 1983009808
        %v392 = vunpack.c.0.s8 %v391
        %v393 = vlaneseq
        %v394 = vshrl.u32 %v393, 7
        %v395 = vsub.s32 %v392, %v394
        %v396 = vrot.slane %v382, %v395
        %v397 = vcombine.high %v389, %v389
        %v401 = vpack.c.bf16 %v389, %v389
        %v402 = vpack.c.bf16 %v397, %v397
        %v403 = vpack.c.bf16 %v396, %v396
        %v407 = vunpack.c.l.b16 %v401
        %v408 = vunpack.c.l.b16 %v402
        %v409 = vunpack.c.l.b16 %v403
        %v410 = vpack.c.b16 %v408, %v407
        %v411 = vpack.c.b16 %v409, %v409
        %412 = vrot.lane.b32.xlu0 %v410, 17
        %v413 = vpop.permute.xlu0 %412
        %414 = vrot.lane.b32.xlu0 %v411, 17
        %v415 = vpop.permute.xlu0 %414
        %v416 = vrot.slane %v413, 4
        %v417 = vrot.slane %v415, 4
        %vm418 = vcmask 1043456
        %v419 = vsel %vm418, %v416, %v417
        %vm420 = vcmask 138240
        %v421 = vsel %vm420, %v413, %v419
        %423 = vst [vmem:[#allocation3] sm:$0x11] %v421
        %v424 = vld [vmem:[#allocation2] sm:$0x3f]
        %s425 = scalar_lea.vmem %s5, 2
        %v426 = vld [vmem:[%s425] ss:$8 sm:$0x3]
        %v428 = vlaneseq
        %v429 = vshrl.u32 %v428, 7
        %v430 = vsub.s32 0, %v429
        %v431 = vrot.slane %v426, %v430
        %v432 = vlaneseq
        %v433 = vshrl.u32 %v432, 7
        %v434 = vsub.s32 1, %v433
        %v435 = vrot.slane %v426, %v434
        %v436 = vcombine.low %v431, %v435
        %v438 = vunpack.c.l.s4 1983009808
        %v439 = vunpack.c.0.s8 %v438
        %v440 = vlaneseq
        %v441 = vshrl.u32 %v440, 7
        %v442 = vsub.s32 %v439, %v441
        %v443 = vrot.slane %v436, %v442
        %444 = vrot.lane.b32.xlu0 %v443, 112
        %v445 = vpop.permute.xlu0 %444
        %v446 = vrot.slane %v445, 6
        %vm447 = vcmask 916480
        %v448 = vsel %vm447, %v446, %v445
        %v450 = vmul.f32 %v424, %v448
        %v452 = vcombine.high %v450, %v450
        %v454 = vunpack.c.l.s4 1983009808
        %v455 = vunpack.c.0.s8 %v454
        %v456 = vlaneseq
        %v457 = vshrl.u32 %v456, 7
        %v458 = vsub.s32 %v455, %v457
        %v459 = vrot.slane %v450, %v458
        %v461 = vunpack.c.l.s4 1983009808
        %v462 = vunpack.c.0.s8 %v461
        %v463 = vlaneseq
        %v464 = vshrl.u32 %v463, 7
        %v465 = vsub.s32 %v462, %v464
        %v466 = vrot.slane %v452, %v465
        %v467 = vcombine.high %v459, %v459
        %v471 = vpack.c.bf16 %v459, %v459
        %v472 = vpack.c.bf16 %v467, %v467
        %v473 = vpack.c.bf16 %v466, %v466
        %v477 = vunpack.c.l.b16 %v471
        %v478 = vunpack.c.l.b16 %v472
        %v479 = vunpack.c.l.b16 %v473
        %v480 = vpack.c.b16 %v478, %v477
        %v481 = vpack.c.b16 %v479, %v479
        %v482 = vrot.slane %v480, 7
        %v483 = vrot.slane %v481, 7
        %484 = vrot.lane.b32.xlu0 %v482, 16
        %v485 = vpop.permute.xlu0 %484
        %486 = vrot.lane.b32.xlu0 %v483, 16
        %v487 = vpop.permute.xlu0 %486
        %v488 = vrot.slane %v485, 4
        %v489 = vrot.slane %v487, 4
        %v490 = vsel %vm418, %v488, %v489
        %vm491 = vcmask 130048
        %v492 = vsel %vm491, %v485, %v490
        %494 = vst [vmem:[#allocation3] sm:$0x22] %v492
        %v495 = vld [vmem:[#allocation2] sm:$0x3f]
        %s496 = scalar_lea.vmem %s5, 5
        %v497 = vld [vmem:[%s496] ss:$8 sm:$0x3]
        %v499 = vlaneseq
        %v500 = vshrl.u32 %v499, 7
        %v501 = vsub.s32 0, %v500
        %v502 = vrot.slane %v497, %v501
        %v503 = vlaneseq
        %v504 = vshrl.u32 %v503, 7
        %v505 = vsub.s32 1, %v504
        %v506 = vrot.slane %v497, %v505
        %v507 = vcombine.low %v502, %v506
        %v509 = vunpack.c.l.s4 1983009808
        %v510 = vunpack.c.0.s8 %v509
        %v511 = vlaneseq
        %v512 = vshrl.u32 %v511, 7
        %v513 = vsub.s32 %v510, %v512
        %v514 = vrot.slane %v507, %v513
        %515 = vrot.lane.b32.xlu0 %v514, 113
        %v516 = vpop.permute.xlu0 %515
        %v517 = vrot.slane %v516, 6
        %vm518 = vcmask 924672
        %v519 = vsel %vm518, %v517, %v516
        %v521 = vmul.f32 %v495, %v519
        %v523 = vcombine.high %v521, %v521
        %v525 = vunpack.c.l.s4 1983009808
        %v526 = vunpack.c.0.s8 %v525
        %v527 = vlaneseq
        %v528 = vshrl.u32 %v527, 7
        %v529 = vsub.s32 %v526, %v528
        %v530 = vrot.slane %v521, %v529
        %v532 = vunpack.c.l.s4 1983009808
        %v533 = vunpack.c.0.s8 %v532
        %v534 = vlaneseq
        %v535 = vshrl.u32 %v534, 7
        %v536 = vsub.s32 %v533, %v535
        %v537 = vrot.slane %v523, %v536
        %v538 = vcombine.high %v530, %v530
        %v542 = vpack.c.bf16 %v530, %v530
        %v543 = vpack.c.bf16 %v538, %v538
        %v544 = vpack.c.bf16 %v537, %v537
        %v548 = vunpack.c.l.b16 %v542
        %v549 = vunpack.c.l.b16 %v543
        %v550 = vunpack.c.l.b16 %v544
        %v551 = vpack.c.b16 %v549, %v548
        %v552 = vpack.c.b16 %v550, %v550
        %v553 = vrot.slane %v551, 6
        %v554 = vrot.slane %v552, 6
        %555 = vrot.lane.b32.xlu0 %v553, 15
        %v556 = vpop.permute.xlu0 %555
        %557 = vrot.lane.b32.xlu0 %v554, 15
        %v558 = vpop.permute.xlu0 %557
        %v559 = vrot.slane %v556, 4
        %v560 = vrot.slane %v558, 4
        %v561 = vsel %vm418, %v559, %v560
        %vm562 = vcmask 121856
        %v563 = vsel %vm562, %v556, %v561
        %565 = vst [vmem:[#allocation3] sm:$0x44] %v563
        %v566 = vld [vmem:[#allocation2] sm:$0x3f]
        %v567 = vld [vmem:[%s5] ss:$8 sm:$0x3]
        %v569 = vlaneseq
        %v570 = vshrl.u32 %v569, 7
        %v571 = vsub.s32 0, %v570
        %v572 = vrot.slane %v567, %v571
        %v573 = vlaneseq
        %v574 = vshrl.u32 %v573, 7
        %v575 = vsub.s32 1, %v574
        %v576 = vrot.slane %v567, %v575
        %v577 = vcombine.low %v572, %v576
        %v579 = vunpack.c.l.s4 1983009808
        %v580 = vunpack.c.0.s8 %v579
        %v581 = vlaneseq
        %v582 = vshrl.u32 %v581, 7
        %v583 = vsub.s32 %v580, %v582
        %v584 = vrot.slane %v577, %v583
        %585 = vrot.lane.b32.xlu0 %v584, 127
        %v586 = vpop.permute.xlu0 %585
        %v587 = vrot.slane %v586, 6
        %vm588 = vcmask 1039360
        %v589 = vsel %vm588, %v587, %v586
        %v591 = vmul.f32 %v566, %v589
        %v593 = vcombine.high %v591, %v591
        %v595 = vunpack.c.l.s4 1983009808
        %v596 = vunpack.c.0.s8 %v595
        %v597 = vlaneseq
        %v598 = vshrl.u32 %v597, 7
        %v599 = vsub.s32 %v596, %v598
        %v600 = vrot.slane %v591, %v599
        %v602 = vunpack.c.l.s4 1983009808
        %v603 = vunpack.c.0.s8 %v602
        %v604 = vlaneseq
        %v605 = vshrl.u32 %v604, 7
        %v606 = vsub.s32 %v603, %v605
        %v607 = vrot.slane %v593, %v606
        %v608 = vcombine.high %v600, %v600
        %v612 = vpack.c.bf16 %v600, %v600
        %v613 = vpack.c.bf16 %v608, %v608
        %v614 = vpack.c.bf16 %v607, %v607
        %v618 = vunpack.c.l.b16 %v612
        %v619 = vunpack.c.l.b16 %v613
        %v620 = vunpack.c.l.b16 %v614
        %v621 = vpack.c.b16 %v619, %v618
        %v622 = vpack.c.b16 %v620, %v620
        %v623 = vrot.slane %v621, 5
        %v624 = vrot.slane %v622, 5
        %625 = vrot.lane.b32.xlu0 %v623, 1
        %v626 = vpop.permute.xlu0 %625
        %627 = vrot.lane.b32.xlu0 %v624, 1
        %v628 = vpop.permute.xlu0 %627
        %v629 = vrot.slane %v626, 4
        %v630 = vrot.slane %v628, 4
        %v631 = vsel %vm418, %v629, %v630
        %vm632 = vcmask 7168
        %v633 = vsel %vm632, %v626, %v631
        %635 = vst [vmem:[#allocation3] sm:$0x88] %v633
        %v636 = vpack.c.bf16 %v338, %v338
        %v637 = vpack.c.bf16 %v339, %v339
        %v640 = vunpack.c.l.b16 %v636
        %v641 = vunpack.c.l.b16 %v637
        %v642 = vpack.c.b16 %v641, %v640
        %644 = vst [vmem:[#allocation3 + $0x8] sm:$0x11] %v642
        %v645 = vld [vmem:[#allocation2 + $0x2] sm:$0x3f]
        %s646 = scalar_lea.vmem %s5, 1
        %v647 = vld [vmem:[%s646] ss:$8 sm:$0x3]
        %v649 = vlaneseq
        %v650 = vshrl.u32 %v649, 7
        %v651 = vsub.s32 0, %v650
        %v652 = vrot.slane %v647, %v651
        %v653 = vlaneseq
        %v654 = vshrl.u32 %v653, 7
        %v655 = vsub.s32 1, %v654
        %v656 = vrot.slane %v647, %v655
        %v657 = vcombine.low %v652, %v656
        %v659 = vunpack.c.l.s4 1983009808
        %v660 = vunpack.c.0.s8 %v659
        %v661 = vlaneseq
        %v662 = vshrl.u32 %v661, 7
        %v663 = vsub.s32 %v660, %v662
        %v664 = vrot.slane %v657, %v663
        %665 = vrot.lane.b32.xlu0 %v664, 1
        %v666 = vpop.permute.xlu0 %665
        %v667 = vrot.slane %v666, 6
        %vm668 = vcmask 7168
        %v669 = vsel %vm668, %v667, %v666
        %v671 = vmul.f32 %v645, %v669
        %v673 = vcombine.high %v671, %v671
        %v675 = vunpack.c.l.s4 1983009808
        %v676 = vunpack.c.0.s8 %v675
        %v677 = vlaneseq
        %v678 = vshrl.u32 %v677, 7
        %v679 = vsub.s32 %v676, %v678
        %v680 = vrot.slane %v671, %v679
        %v682 = vunpack.c.l.s4 1983009808
        %v683 = vunpack.c.0.s8 %v682
        %v684 = vlaneseq
        %v685 = vshrl.u32 %v684, 7
        %v686 = vsub.s32 %v683, %v685
        %v687 = vrot.slane %v673, %v686
        %v688 = vcombine.high %v680, %v680
        %v692 = vpack.c.bf16 %v680, %v680
        %v693 = vpack.c.bf16 %v688, %v688
        %v694 = vpack.c.bf16 %v687, %v687
        %v698 = vunpack.c.l.b16 %v692
        %v699 = vunpack.c.l.b16 %v693
        %v700 = vunpack.c.l.b16 %v694
        %v701 = vpack.c.b16 %v699, %v698
        %v702 = vpack.c.b16 %v700, %v700
        %v703 = vrot.slane %v701, 7
        %v704 = vrot.slane %v702, 7
        %705 = vrot.lane.b32.xlu0 %v703, 127
        %v706 = vpop.permute.xlu0 %705
        %707 = vrot.lane.b32.xlu0 %v704, 127
        %v708 = vpop.permute.xlu0 %707
        %v709 = vrot.slane %v706, 4
        %v710 = vrot.slane %v708, 4
        %v711 = vsel %vm418, %v709, %v710
        %vm712 = vcmask 1039360
        %v713 = vsel %vm712, %v706, %v711
        %715 = vst [vmem:[#allocation3 + $0x8] sm:$0x22] %v713
        %v716 = vld [vmem:[#allocation2 + $0x2] sm:$0x3f]
        %s717 = scalar_lea.vmem %s5, 6
        %v718 = vld [vmem:[%s717] ss:$8 sm:$0x3]
        %v720 = vlaneseq
        %v721 = vshrl.u32 %v720, 7
        %v722 = vsub.s32 0, %v721
        %v723 = vrot.slane %v718, %v722
        %v724 = vlaneseq
        %v725 = vshrl.u32 %v724, 7
        %v726 = vsub.s32 1, %v725
        %v727 = vrot.slane %v718, %v726
        %v728 = vcombine.low %v723, %v727
        %v730 = vunpack.c.l.s4 1983009808
        %v731 = vunpack.c.0.s8 %v730
        %v732 = vlaneseq
        %v733 = vshrl.u32 %v732, 7
        %v734 = vsub.s32 %v731, %v733
        %v735 = vrot.slane %v728, %v734
        %736 = vrot.lane.b32.xlu0 %v735, 15
        %v737 = vpop.permute.xlu0 %736
        %v738 = vrot.slane %v737, 6
        %vm739 = vcmask 121856
        %v740 = vsel %vm739, %v738, %v737
        %v742 = vmul.f32 %v716, %v740
        %v744 = vcombine.high %v742, %v742
        %v746 = vunpack.c.l.s4 1983009808
        %v747 = vunpack.c.0.s8 %v746
        %v748 = vlaneseq
        %v749 = vshrl.u32 %v748, 7
        %v750 = vsub.s32 %v747, %v749
        %v751 = vrot.slane %v742, %v750
        %v753 = vunpack.c.l.s4 1983009808
        %v754 = vunpack.c.0.s8 %v753
        %v755 = vlaneseq
        %v756 = vshrl.u32 %v755, 7
        %v757 = vsub.s32 %v754, %v756
        %v758 = vrot.slane %v744, %v757
        %v759 = vcombine.high %v751, %v751
        %v763 = vpack.c.bf16 %v751, %v751
        %v764 = vpack.c.bf16 %v759, %v759
        %v765 = vpack.c.bf16 %v758, %v758
        %v769 = vunpack.c.l.b16 %v763
        %v770 = vunpack.c.l.b16 %v764
        %v771 = vunpack.c.l.b16 %v765
        %v772 = vpack.c.b16 %v770, %v769
        %v773 = vpack.c.b16 %v771, %v771
        %v774 = vrot.slane %v772, 6
        %v775 = vrot.slane %v773, 6
        %776 = vrot.lane.b32.xlu0 %v774, 113
        %v777 = vpop.permute.xlu0 %776
        %778 = vrot.lane.b32.xlu0 %v775, 113
        %v779 = vpop.permute.xlu0 %778
        %v780 = vrot.slane %v777, 4
        %v781 = vrot.slane %v779, 4
        %v782 = vsel %vm418, %v780, %v781
        %vm783 = vcmask 924672
        %v784 = vsel %vm783, %v777, %v782
        %786 = vst [vmem:[#allocation3 + $0x8] sm:$0x44] %v784
        %v787 = vld [vmem:[#allocation2 + $0x2] sm:$0x3f]
        %s788 = scalar_lea.vmem %s5, 3
        %v789 = vld [vmem:[%s788] ss:$8 sm:$0x3]
        %v791 = vlaneseq
        %v792 = vshrl.u32 %v791, 7
        %v793 = vsub.s32 0, %v792
        %v794 = vrot.slane %v789, %v793
        %v795 = vlaneseq
        %v796 = vshrl.u32 %v795, 7
        %v797 = vsub.s32 1, %v796
        %v798 = vrot.slane %v789, %v797
        %v799 = vcombine.low %v794, %v798
        %v801 = vunpack.c.l.s4 1983009808
        %v802 = vunpack.c.0.s8 %v801
        %v803 = vlaneseq
        %v804 = vshrl.u32 %v803, 7
        %v805 = vsub.s32 %v802, %v804
        %v806 = vrot.slane %v799, %v805
        %807 = vrot.lane.b32.xlu0 %v806, 16
        %v808 = vpop.permute.xlu0 %807
        %v809 = vrot.slane %v808, 6
        %vm810 = vcmask 130048
        %v811 = vsel %vm810, %v809, %v808
        %v813 = vmul.f32 %v787, %v811
        %v815 = vcombine.high %v813, %v813
        %v817 = vunpack.c.l.s4 1983009808
        %v818 = vunpack.c.0.s8 %v817
        %v819 = vlaneseq
        %v820 = vshrl.u32 %v819, 7
        %v821 = vsub.s32 %v818, %v820
        %v822 = vrot.slane %v813, %v821
        %v824 = vunpack.c.l.s4 1983009808
        %v825 = vunpack.c.0.s8 %v824
        %v826 = vlaneseq
        %v827 = vshrl.u32 %v826, 7
        %v828 = vsub.s32 %v825, %v827
        %v829 = vrot.slane %v815, %v828
        %v830 = vcombine.high %v822, %v822
        %v834 = vpack.c.bf16 %v822, %v822
        %v835 = vpack.c.bf16 %v830, %v830
        %v836 = vpack.c.bf16 %v829, %v829
        %v840 = vunpack.c.l.b16 %v834
        %v841 = vunpack.c.l.b16 %v835
        %v842 = vunpack.c.l.b16 %v836
        %v843 = vpack.c.b16 %v841, %v840
        %v844 = vpack.c.b16 %v842, %v842
        %v845 = vrot.slane %v843, 5
        %v846 = vrot.slane %v844, 5
        %847 = vrot.lane.b32.xlu0 %v845, 112
        %v848 = vpop.permute.xlu0 %847
        %849 = vrot.lane.b32.xlu0 %v846, 112
        %v850 = vpop.permute.xlu0 %849
        %v851 = vrot.slane %v848, 4
        %v852 = vrot.slane %v850, 4
        %v853 = vsel %vm418, %v851, %v852
        %vm854 = vcmask 916480
        %v855 = vsel %vm854, %v848, %v853
        %857 = vst [vmem:[#allocation3 + $0x8] sm:$0x88] %v855
        %v858 = vld [vmem:[#allocation2 + $0x2] sm:$0x3f]
        %s859 = scalar_lea.vmem %s5, 7
        %v860 = vld [vmem:[%s859] ss:$8 sm:$0x3]
        %v862 = vlaneseq
        %v863 = vshrl.u32 %v862, 7
        %v864 = vsub.s32 0, %v863
        %v865 = vrot.slane %v860, %v864
        %v866 = vlaneseq
        %v867 = vshrl.u32 %v866, 7
        %v868 = vsub.s32 1, %v867
        %v869 = vrot.slane %v860, %v868
        %v870 = vcombine.low %v865, %v869
        %v872 = vunpack.c.l.s4 1983009808
        %v873 = vunpack.c.0.s8 %v872
        %v874 = vlaneseq
        %v875 = vshrl.u32 %v874, 7
        %v876 = vsub.s32 %v873, %v875
        %v877 = vrot.slane %v870, %v876
        %878 = vrot.lane.b32.xlu0 %v877, 17
        %v879 = vpop.permute.xlu0 %878
        %v880 = vrot.slane %v879, 6
        %vm881 = vcmask 138240
        %v882 = vsel %vm881, %v880, %v879
        %v884 = vmul.f32 %v858, %v882
        %v886 = vcombine.high %v884, %v884
        %v888 = vunpack.c.l.s4 1983009808
        %v889 = vunpack.c.0.s8 %v888
        %v890 = vlaneseq
        %v891 = vshrl.u32 %v890, 7
        %v892 = vsub.s32 %v889, %v891
        %v893 = vrot.slane %v884, %v892
        %v895 = vunpack.c.l.s4 1983009808
        %v896 = vunpack.c.0.s8 %v895
        %v897 = vlaneseq
        %v898 = vshrl.u32 %v897, 7
        %v899 = vsub.s32 %v896, %v898
        %v900 = vrot.slane %v886, %v899
        %v901 = vcombine.high %v893, %v893
        %v905 = vpack.c.bf16 %v893, %v893
        %v906 = vpack.c.bf16 %v901, %v901
        %v907 = vpack.c.bf16 %v900, %v900
        %v911 = vunpack.c.l.b16 %v905
        %v912 = vunpack.c.l.b16 %v906
        %v913 = vunpack.c.l.b16 %v907
        %v914 = vpack.c.b16 %v912, %v911
        %v915 = vpack.c.b16 %v913, %v913
        %916 = vrot.lane.b32.xlu0 %v914, 111
        %v917 = vpop.permute.xlu0 %916
        %918 = vrot.lane.b32.xlu0 %v915, 111
        %v919 = vpop.permute.xlu0 %918
        %v920 = vrot.slane %v917, 4
        %v921 = vrot.slane %v919, 4
        %v922 = vsel %vm418, %v920, %v921
        %vm923 = vcmask 908288
        %v924 = vsel %vm923, %v917, %v922
        %926 = vst [vmem:[#allocation3 + $0x10] sm:$0x11] %v924
        %v927 = vld [vmem:[%s3] sm:$0x3]
        %v928 = vld [vmem:[#allocation3] sm:$0xff]
        %v929 = vld [vmem:[#allocation3 + $0x8] sm:$0xff]
        %v930 = vld [vmem:[#allocation3 + $0x10] sm:$0x11]
        %v931 = vld [vmem:[%s4] sm:$0xf]
        %933 = vset.pattern.permute.xlu0 0
        %934 = vperm.xlu0 %933, %v931
        %v935 = vpop.permute.xlu0 %934
        %v940 = vunpack.c.l.b16 %v928
        %v941 = vunpack.c.h.b16 %v928
        %v942 = vunpack.c.l.b16 %v929
        %v943 = vunpack.c.h.b16 %v929
        %v944 = vunpack.c.l.b16 %v930
        %v945 = vunpack.c.h.b16 %v930
        %v946 = vpack.c.b16 %v942, %v940
        %v947 = vpack.c.b16 %v943, %v941
        %v948 = vpack.c.b16 %v944, %v944
        %v949 = vpack.c.b16 %v945, %v945
        %vm952 = vcmask 146432
        %v954 = vsel %vm952, %v927, 0
        %vm956 = vcmask 1040384
        %v958 = vsel %vm956, %v948, 0
        %v961 = vsel %vm956, %v949, 0
        %963 = vmatprep.subr.bf16.mxu0 %v947
        %964 = vmatpush1.bf16.msra.mxu0 %v946
        %965 = vmatprep.subr.bf16.mxu0 %v961
        %966 = vmatpush1.bf16.msra.mxu0 %v958
        %967 = vmatprep.subr.bf16.mxu0 0
        %968 = vmatpush1.bf16.msra.mxu0 0
        %969 = vmatprep.subr.bf16.mxu0 0
        %970 = vmatpush1.bf16.msra.mxu0 0
        %971 = vmatprep.subr.bf16.mxu0 0
        %972 = vmatpush1.bf16.msra.mxu0 0
        %973 = vmatprep.subr.bf16.mxu0 0
        %974 = vmatpush1.bf16.msra.mxu0 0
        %975 = vmatprep.subr.bf16.mxu0 0
        %976 = vmatpush1.bf16.msra.mxu0 0
        %977 = vmatprep.subr.bf16.mxu0 0
        %978 = vmatpush1.bf16.msra.mxu0 0
        %979 = vmatprep.subr.bf16.mxu0 0
        %980 = vmatpush1.bf16.msra.mxu0 0
        %981 = vmatprep.subr.bf16.mxu0 0
        %982 = vmatpush1.bf16.msra.mxu0 0
        %983 = vmatprep.subr.bf16.mxu0 0
        %984 = vmatpush1.bf16.msra.mxu0 0
        %985 = vmatprep.subr.bf16.mxu0 0
        %986 = vmatpush1.bf16.msra.mxu0 0
        %987 = vmatprep.subr.bf16.mxu0 0
        %988 = vmatpush1.bf16.msra.mxu0 0
        %989 = vmatprep.subr.bf16.mxu0 0
        %990 = vmatpush1.bf16.msra.mxu0 0
        %991 = vmatprep.subr.bf16.mxu0 0
        %992 = vmatpush1.bf16.msra.mxu0 0
        %993 = vmatprep.subr.bf16.mxu0 0
        %994 = vmatpush1.bf16.msra.mxu0 0
        %995 = vmatprep.mubr.bf16.mxu0 0
        %996 = vmatmul.mubr.bf16.gmra.mrb[0].mxu0 %v954
        %v997 = vpop.f32.mrb[0].mxu0
        %v998 = vadd.f32 %v935, %v997
        %v999 = vpop.f32.mrb[0].mxu0
        %v1000 = vadd.f32 %v935, %v999
        %v1001 = vpop.f32.mrb[0].mxu0
        %v1002 = vpop.f32.mrb[0].mxu0
        %1003 = vdwg.mxu0
        %vm1004 = vcmp.gt.f32.partialorder %v998, 0.0
        %vm1005 = vcmp.gt.f32.partialorder %v1000, 0.0
        %v1006 = vmul.f32 %v998, 0.1
        %v1007 = vmul.f32 %v1000, 0.1
        %v1008 = vsel %vm1004, %v998, %v1006
        %v1009 = vsel %vm1005, %v1000, %v1007
        %v1012 = vcombine.low %v1008, %v1009
        %v1014 = vadd.f32 %v269, %v1012
        %1015 = vst [vmem:[%s267] sm:$0xff] %v1014
        %s1016 = sand.u32 %s162, 1
        %s1017 = scalar_lea.sflag [#allocation6], %s1016
        %s1018 = sand.u32 %s162, 1
        %s1019 = smul.addr %s1018, 8
        %s1020 = scalar_lea.vmem [#allocation7], %s1019
        // Predicated region
        $region49: #{tpu_custom_call.1} parent=43 // pred_check
          %p1021 = pneg %p172
        $region50: #{tpu_custom_call.1} parent=43 // pred_check_branch
          %1023 = sbr.rel (%p1021) target = $region52
        $region51: #{tpu_custom_call.1} parent=43 // pred_region
          %s1025 = ssub.s32 128, 128
          %1026 = vsyncadd %s1017, %s1025
          %s1027 = smul.addr %s23, 2
          %s1028 = smul.addr %s1027, 64
          %s1029 = scalar_lea.hbm %s6, %s1028
          %s1031 = sshll.u32 %s1020, 4
          %s1032 = int_to_ptr.vmem [resolvable:$true] %s1031
          %1034 = dma.vmem_to_hbm [thread:$0]  %s1032, 128, %s1029, %s1017
        $region52: #{tpu_custom_call.1} parent=43 // pred_fallthru
          _
      $region44: #{tpu_custom_call.1} parent=5 // pred_fallthru
        _
      %p1035 = scmp.le.s32.totalorder 2, %s18
      // Predicated region
      $region53: #{tpu_custom_call.1} parent=5 // pred_check
        %p1036 = pneg %p1035
      $region54: #{tpu_custom_call.1} parent=5 // pred_check_branch
        %1038 = sbr.rel (%p1036) target = $region56
      $region55: #{tpu_custom_call.1} parent=5 // pred_region
        %s1039 = ssub.s32 %s18, 2
        // Predicated region
        $region57: #{tpu_custom_call.1} parent=55 // pred_check
          %p1040 = pneg %p178
        $region58: #{tpu_custom_call.1} parent=55 // pred_check_branch
          %1042 = sbr.rel (%p1040) target = $region60
        $region59: #{tpu_custom_call.1} parent=55 // pred_region
          %s1043 = sand.u32 %s163, 1
          %s1044 = scalar_lea.sflag [#allocation6], %s1043
          %s1045 = sand.u32 %s163, 1
          %s1046 = smul.addr %s1045, 8
          %s1047 = scalar_lea.vmem [#allocation7], %s1046
          %1048 = dma.done %s1044, 128
        $region60: #{tpu_custom_call.1} parent=55 // pred_fallthru
          _
      $region56: #{tpu_custom_call.1} parent=5 // pred_fallthru
        _
    $region6: #{tpu_custom_call.1} parent=1 // loop_footer
      %s22 = sadd.s32 1, %s18
    $region7: #{tpu_custom_call.1} parent=1 // loop_footer_branch
      %17 = sbr.rel target = $region3
    $region8: #{tpu_custom_call.1} parent=1 // loop_exit
      _
    %1049 = vsyncpa [#allocation5], 1
    %s1050 = scalar_lea.sflag [#allocation5], 1
    %1051 = vsyncpa %s1050, 1
    %1052 = vsyncpa [#allocation6], 1
    %s1053 = scalar_lea.sflag [#allocation6], 1
    %1054 = vsyncpa %s1053, 1

</llo_original>
